<compile_context>
chip_gen: v5e
topology: v5e:2x2
jax: 0.10.0
libtpu: 0.0.40
codegen_flags: <defaults>
</compile_context>

<pallas_src>
import jax
import jax.numpy as jnp
from jax.experimental import pallas as pl
from jax.experimental.pallas import tpu as pltpu

LANE = 128
SUBLANE = 8


def dqn_kernel(x_ref, w1_ref, b1_ref, w2_ref, b2_ref, w3_ref, b3_ref, o_ref):
    # x tile: [TB, in_dim] bf16; weights bf16 [in, out]; biases f32 [1, out].
    x = x_ref[...]
    # Layer 1: [TB, in] @ [in, 64]  (bf16 MXU, f32 accumulate) + bias -> ReLU (f32)
    h1 = jnp.dot(x, w1_ref[...], preferred_element_type=jnp.float32)
    h1 = jnp.maximum(h1 + b1_ref[...], 0.0)
    # Layer 2: [TB, 64] @ [64, 64]
    h2 = jnp.dot(h1.astype(jnp.bfloat16), w2_ref[...],
                 preferred_element_type=jnp.float32)
    h2 = jnp.maximum(h2 + b2_ref[...], 0.0)
    # Layer 3: [TB, 64] @ [64, out_pad]  (out_pad = 128 -> unmasked lane-dense store)
    out = jnp.dot(h2.astype(jnp.bfloat16), w3_ref[...],
                  preferred_element_type=jnp.float32)
    o_ref[...] = (out + b3_ref[...]).astype(o_ref.dtype)


def dqn_forward(x, params, *, block_b=512):
    """x: [B, input_dim] float32; params: w_i [in,out], b_i [1,out] (float32)."""
    B, in_dim = x.shape
    hidden = params["w1"].shape[1]
    out_dim = params["w3"].shape[1]

    # bf16 MXU inputs; biases stay f32 (f32 accumulation + f32 epilogue in kernel).
    x_bf = x.astype(jnp.bfloat16)
    w1 = params["w1"].astype(jnp.bfloat16)
    w2 = params["w2"].astype(jnp.bfloat16)
    w3 = params["w3"].astype(jnp.bfloat16)
    b1 = params["b1"].astype(jnp.float32)
    b2 = params["b2"].astype(jnp.float32)
    b3 = params["b3"].astype(jnp.float32)

    # Lane-dense output: pad the final layer to a multiple of 128 output lanes.
    out_pad = max(LANE, ((out_dim + LANE - 1) // LANE) * LANE)
    w3p = jnp.zeros((hidden, out_pad), jnp.bfloat16).at[:, :out_dim].set(w3)
    b3p = jnp.zeros((1, out_pad), jnp.float32).at[:, :out_dim].set(b3)

    # Batch tile: multiple of 8 sublanes, capped at block_b, bounded VMEM per step.
    tb = min(block_b, ((B + SUBLANE - 1) // SUBLANE) * SUBLANE)
    tb = max(SUBLANE, ((tb + SUBLANE - 1) // SUBLANE) * SUBLANE)
    b_pad = ((B + tb - 1) // tb) * tb
    if b_pad != B:
        x_bf = jnp.pad(x_bf, ((0, b_pad - B), (0, 0)))

    grid = (b_pad // tb,)

    # Weights/biases: block index never changes across the grid -> VMEM-resident.
    def resident(a):
        return pl.BlockSpec(a.shape, lambda i: (0,) * a.ndim)

    flops = 2 * b_pad * (in_dim * hidden + hidden * hidden + hidden * out_pad)
    bytes_accessed = (x_bf.size * 2 + w1.size * 2 + w2.size * 2 + w3p.size * 2
                      + (b1.size + b2.size + b3p.size) * 4
                      + b_pad * out_pad * 4)

    out = pl.pallas_call(
        dqn_kernel,
        out_shape=jax.ShapeDtypeStruct((b_pad, out_pad), jnp.float32),
        grid_spec=pl.GridSpec(
            grid=grid,
            in_specs=[
                pl.BlockSpec((tb, in_dim), lambda i: (i, 0)),
                resident(w1), resident(b1),
                resident(w2), resident(b2),
                resident(w3p), resident(b3p),
            ],
            out_specs=pl.BlockSpec((tb, out_pad), lambda i: (i, 0)),
        ),
        compiler_params=pltpu.CompilerParams(
            dimension_semantics=("parallel",),   # shards batch tiles across TCs on v7x
        ),
        cost_estimate=pl.CostEstimate(
            flops=flops, transcendentals=0, bytes_accessed=bytes_accessed),
    )(x_bf, w1, b1, w2, b2, w3p, b3p)

    return out[:B, :out_dim]


def init_params(key, input_dim=3, hidden=64, output_dim=4):
    """Deterministic init matching nn.Linear default (uniform +-1/sqrt(fan_in))."""
    ks = jax.random.split(key, 6)

    def linear(kw, kb, fan_in, fan_out):
        bound = 1.0 / jnp.sqrt(float(fan_in))
        w = jax.random.uniform(kw, (fan_in, fan_out), jnp.float32, -bound, bound)
        b = jax.random.uniform(kb, (1, fan_out), jnp.float32, -bound, bound)
        return w, b

    w1, b1 = linear(ks[0], ks[1], input_dim, hidden)
    w2, b2 = linear(ks[2], ks[3], hidden, hidden)
    w3, b3 = linear(ks[4], ks[5], hidden, output_dim)
    return {"w1": w1, "b1": b1, "w2": w2, "b2": b2, "w3": w3, "b3": b3}


def dqn_ref(x, p):
    """Pure-JAX reference with the same bf16-input / f32-accumulate numerics."""
    f = lambda a: a.astype(jnp.bfloat16).astype(jnp.float32)
    h1 = jnp.maximum(
        jnp.dot(f(x), f(p["w1"]), preferred_element_type=jnp.float32) + p["b1"], 0.0)
    h2 = jnp.maximum(
        jnp.dot(f(h1), f(p["w2"]), preferred_element_type=jnp.float32) + p["b2"], 0.0)
    return jnp.dot(f(h2), f(p["w3"]), preferred_element_type=jnp.float32) + p["b3"]


if __name__ == "__main__":
    key = jax.random.PRNGKey(0)
    kx, kp = jax.random.split(key)

    # Small demo shapes (at B=8 plain XLA is just as fast; the kernel pays off at
    # real replay-batch sizes where the batch grid amortizes per-step overhead).
    B, input_dim, output_dim = 8, 3, 4
    x = jax.random.normal(kx, (B, input_dim), dtype=jnp.float32)
    params = init_params(kp, input_dim=input_dim, hidden=64, output_dim=output_dim)

    out = dqn_forward(x, params)
    out = jax.block_until_ready(out)

    ref = dqn_ref(x, params)
    assert out.shape == (B, output_dim)
    assert jnp.allclose(out, ref, atol=1e-3, rtol=1e-3), float(
        jnp.max(jnp.abs(out - ref)))

    print("KERNEL_OK")
</pallas_src>

<mosaic_0001>
module attributes {stable_mosaic.version = 11 : i64} {
  func.func @dqn_kernel(%arg0: i32, %arg1: memref<8x3xbf16, #tpu.memory_space<vmem>>, %arg2: memref<3x64xbf16, #tpu.memory_space<vmem>>, %arg3: memref<1x64xf32, #tpu.memory_space<vmem>>, %arg4: memref<64x64xbf16, #tpu.memory_space<vmem>>, %arg5: memref<1x64xf32, #tpu.memory_space<vmem>>, %arg6: memref<64x128xbf16, #tpu.memory_space<vmem>>, %arg7: memref<1x128xf32, #tpu.memory_space<vmem>>, %arg8: memref<8x128xf32, #tpu.memory_space<vmem>>) attributes {dimension_semantics = [#tpu.dimension_semantics<parallel>], iteration_bounds = array<i64: 1>, scalar_prefetch = 0 : i64, scratch_operands = 0 : i64, tpu.core_type = #tpu.core_type<tc>, window_params = [{transform_indices = @transform_0, window_bounds = array<i64: 8, 3>}, {pipeline_mode = #tpu.pipeline_mode<synchronous>, transform_indices = @transform_1, window_bounds = array<i64: 3, 64>}, {pipeline_mode = #tpu.pipeline_mode<synchronous>, transform_indices = @transform_2, window_bounds = array<i64: 1, 64>}, {pipeline_mode = #tpu.pipeline_mode<synchronous>, transform_indices = @transform_3, window_bounds = array<i64: 64, 64>}, {pipeline_mode = #tpu.pipeline_mode<synchronous>, transform_indices = @transform_4, window_bounds = array<i64: 1, 64>}, {pipeline_mode = #tpu.pipeline_mode<synchronous>, transform_indices = @transform_5, window_bounds = array<i64: 64, 128>}, {pipeline_mode = #tpu.pipeline_mode<synchronous>, transform_indices = @transform_6, window_bounds = array<i64: 1, 128>}, {transform_indices = @transform_7, window_bounds = array<i64: 8, 128>}]} {
    %c0 = arith.constant 0 : index
    %c0_0 = arith.constant 0 : index
    %0 = vector.load %arg1[%c0, %c0_0] : memref<8x3xbf16, #tpu.memory_space<vmem>>, vector<8x3xbf16>
    %c0_1 = arith.constant 0 : index
    %c0_2 = arith.constant 0 : index
    %1 = vector.load %arg2[%c0_1, %c0_2] : memref<3x64xbf16, #tpu.memory_space<vmem>>, vector<3x64xbf16>
    %cst = arith.constant dense<0.000000e+00> : vector<8x64xf32>
    %2 = tpu.matmul %0, %1, %cst {dimension_numbers = #tpu.dot_dimension_numbers<[1], [0], [0], [1], [0, 0, 1, 1], [], []>} : vector<8x3xbf16>, vector<3x64xbf16>, vector<8x64xf32> -> vector<8x64xf32>
    %c0_3 = arith.constant 0 : index
    %c0_4 = arith.constant 0 : index
    %3 = vector.load %arg3[%c0_3, %c0_4] : memref<1x64xf32, #tpu.memory_space<vmem>>, vector<1x64xf32>
    %4 = vector.broadcast %3 : vector<1x64xf32> to vector<8x64xf32>
    %5 = arith.addf %2, %4 : vector<8x64xf32>
    %cst_5 = arith.constant 0.000000e+00 : f32
    %6 = vector.broadcast %cst_5 : f32 to vector<8x64xf32>
    %7 = arith.maximumf %5, %6 : vector<8x64xf32>
    %8 = arith.truncf %7 : vector<8x64xf32> to vector<8x64xbf16>
    %c0_6 = arith.constant 0 : index
    %c0_7 = arith.constant 0 : index
    %9 = vector.load %arg4[%c0_6, %c0_7] : memref<64x64xbf16, #tpu.memory_space<vmem>>, vector<64x64xbf16>
    %cst_8 = arith.constant dense<0.000000e+00> : vector<8x64xf32>
    %10 = tpu.matmul %8, %9, %cst_8 {dimension_numbers = #tpu.dot_dimension_numbers<[1], [0], [0], [1], [0, 0, 1, 1], [], []>} : vector<8x64xbf16>, vector<64x64xbf16>, vector<8x64xf32> -> vector<8x64xf32>
    %c0_9 = arith.constant 0 : index
    %c0_10 = arith.constant 0 : index
    %11 = vector.load %arg5[%c0_9, %c0_10] : memref<1x64xf32, #tpu.memory_space<vmem>>, vector<1x64xf32>
    %12 = vector.broadcast %11 : vector<1x64xf32> to vector<8x64xf32>
    %13 = arith.addf %10, %12 : vector<8x64xf32>
    %cst_11 = arith.constant 0.000000e+00 : f32
    %14 = vector.broadcast %cst_11 : f32 to vector<8x64xf32>
    %15 = arith.maximumf %13, %14 : vector<8x64xf32>
    %16 = arith.truncf %15 : vector<8x64xf32> to vector<8x64xbf16>
    %c0_12 = arith.constant 0 : index
    %c0_13 = arith.constant 0 : index
    %17 = vector.load %arg6[%c0_12, %c0_13] : memref<64x128xbf16, #tpu.memory_space<vmem>>, vector<64x128xbf16>
    %cst_14 = arith.constant dense<0.000000e+00> : vector<8x128xf32>
    %18 = tpu.matmul %16, %17, %cst_14 {dimension_numbers = #tpu.dot_dimension_numbers<[1], [0], [0], [1], [0, 0, 1, 1], [], []>} : vector<8x64xbf16>, vector<64x128xbf16>, vector<8x128xf32> -> vector<8x128xf32>
    %c0_15 = arith.constant 0 : index
    %c0_16 = arith.constant 0 : index
    %19 = vector.load %arg7[%c0_15, %c0_16] : memref<1x128xf32, #tpu.memory_space<vmem>>, vector<1x128xf32>
    %20 = vector.broadcast %19 : vector<1x128xf32> to vector<8x128xf32>
    %21 = arith.addf %18, %20 : vector<8x128xf32>
    %c0_17 = arith.constant 0 : index
    %c0_18 = arith.constant 0 : index
    %22 = vector.load %arg8[%c0_17, %c0_18] : memref<8x128xf32, #tpu.memory_space<vmem>>, vector<8x128xf32>
    tpu.vector_store %arg8[%c0_17, %c0_18], %21 {strides = array<i32>} : memref<8x128xf32, #tpu.memory_space<vmem>>, vector<8x128xf32>,
    return
  }
  func.func @transform_0(%arg0: i32) -> (i32, i32) {
    %c0_i32 = arith.constant 0 : i32
    %c0_i32_0 = arith.constant 0 : i32
    return %arg0, %c0_i32 : i32, i32
  }
  func.func @transform_1(%arg0: i32) -> (i32, i32) {
    %c0_i32 = arith.constant 0 : i32
    %c0_i32_0 = arith.constant 0 : i32
    %c0_i32_1 = arith.constant 0 : i32
    return %c0_i32, %c0_i32_0 : i32, i32
  }
  func.func @transform_2(%arg0: i32) -> (i32, i32) {
    %c0_i32 = arith.constant 0 : i32
    %c0_i32_0 = arith.constant 0 : i32
    %c0_i32_1 = arith.constant 0 : i32
    return %c0_i32, %c0_i32_0 : i32, i32
  }
  func.func @transform_3(%arg0: i32) -> (i32, i32) {
    %c0_i32 = arith.constant 0 : i32
    %c0_i32_0 = arith.constant 0 : i32
    %c0_i32_1 = arith.constant 0 : i32
    return %c0_i32, %c0_i32_0 : i32, i32
  }
  func.func @transform_4(%arg0: i32) -> (i32, i32) {
    %c0_i32 = arith.constant 0 : i32
    %c0_i32_0 = arith.constant 0 : i32
    %c0_i32_1 = arith.constant 0 : i32
    return %c0_i32, %c0_i32_0 : i32, i32
  }
  func.func @transform_5(%arg0: i32) -> (i32, i32) {
    %c0_i32 = arith.constant 0 : i32
    %c0_i32_0 = arith.constant 0 : i32
    %c0_i32_1 = arith.constant 0 : i32
    return %c0_i32, %c0_i32_0 : i32, i32
  }
  func.func @transform_6(%arg0: i32) -> (i32, i32) {
    %c0_i32 = arith.constant 0 : i32
    %c0_i32_0 = arith.constant 0 : i32
    %c0_i32_1 = arith.constant 0 : i32
    return %c0_i32, %c0_i32_0 : i32, i32
  }
  func.func @transform_7(%arg0: i32) -> (i32, i32) {
    %c0_i32 = arith.constant 0 : i32
    %c0_i32_0 = arith.constant 0 : i32
    return %arg0, %c0_i32 : i32, i32
  }
}

</mosaic_0001>

<llo_original>
// kernel: tpu_custom_call.1
$region0: #{tpu_custom_call.1}
  #allocation0 [shape = 'u32[]', space=smem, size = 0x4, offset = 0x4, fixed_abs, tag = 'smem constant byte address 0x4 - core index']
  #allocation1 [shape = 'u32[72,128]{1,0:T(1,128)}', space=vmem, size = 0x9000, scoped, tag = 'internal scratch']
  %s0 = inlined_call_operand.vmem [shape: bf16[8,3], index: 0, kind: input, shape index: {}]
  %s1 = inlined_call_operand.vmem [shape: bf16[3,64], index: 1, kind: input, shape index: {}]
  %s2 = inlined_call_operand.vmem [shape: f32[1,64], index: 2, kind: input, shape index: {}]
  %s3 = inlined_call_operand.hbm [shape: bf16[64,64], index: 3, kind: input, shape index: {}]
  %s4 = inlined_call_operand.vmem [shape: f32[1,64], index: 4, kind: input, shape index: {}]
  %s5 = inlined_call_operand.hbm [shape: bf16[64,128], index: 5, kind: input, shape index: {}]
  %s6 = inlined_call_operand.vmem [shape: f32[1,128], index: 6, kind: input, shape index: {}]
  %s7 = inlined_call_operand.hbm [shape: f32[8,128], index: 7, kind: output, shape index: {}]
  %s8 = sld [smem:[#allocation0]]
  $region46: #{tpu_custom_call.1} parent=0
    _
  %s10 = ssub.s32 1, %s8
  %s11 = scalar_select 0, %s10, %s8
  $region1: #{tpu_custom_call.1} parent=0
    #allocation2 [shape = 'u8[16384]{0}', space=vmem, size = 0x4000, scoped, tag = 'input window, operand 3, single buffered']
    #allocation3 [shape = 's32[1]{0}', space=sflag, size = 0x4, scoped, tag = 'scoped memory for tpu_custom_call.1']
    #allocation4 [shape = 's32[1]{0}', space=sflag, size = 0x4, scoped, tag = 'scoped memory for tpu_custom_call.1']
    #allocation5 [shape = 'u8[16384]{0}', space=vmem, size = 0x4000, scoped, tag = 'input window, operand 5, single buffered']
    #allocation6 [shape = 's32[1]{0}', space=sflag, size = 0x4, scoped, tag = 'scoped memory for tpu_custom_call.1']
    #allocation7 [shape = 'u8[4096]{0}', space=vmem, size = 0x1000, scoped, tag = 'output window, operand 0, single buffered']
    %12 = vsyncpa [#allocation3], 0
    %13 = vsyncpa [#allocation6], 0
    %14 = vsyncpa [#allocation4], 0
    // Predicated region
    $region2: #{tpu_custom_call.1} parent=1 // pred_check
      _
    $region3: #{tpu_custom_call.1} parent=1 // pred_check_branch
      %16 = sbr.rel (0) target = $region5
    $region4: #{tpu_custom_call.1} parent=1 // pred_region
      _
    $region5: #{tpu_custom_call.1} parent=1 // pred_fallthru
      _
    // Predicated region
    $region6: #{tpu_custom_call.1} parent=1 // pred_check
      _
    $region7: #{tpu_custom_call.1} parent=1 // pred_check_branch
      %18 = sbr.rel (0) target = $region9
    $region8: #{tpu_custom_call.1} parent=1 // pred_region
      _
    $region9: #{tpu_custom_call.1} parent=1 // pred_fallthru
      _
    // Predicated region
    $region10: #{tpu_custom_call.1} parent=1 // pred_check
      _
    $region11: #{tpu_custom_call.1} parent=1 // pred_check_branch
      %20 = sbr.rel (0) target = $region13
    $region12: #{tpu_custom_call.1} parent=1 // pred_region
      _
    $region13: #{tpu_custom_call.1} parent=1 // pred_fallthru
      _
    // Predicated region
    $region14: #{tpu_custom_call.1} parent=1 // pred_check
      _
    $region15: #{tpu_custom_call.1} parent=1 // pred_check_branch
      %22 = sbr.rel (0) target = $region17
    $region16: #{tpu_custom_call.1} parent=1 // pred_region
      %24 = vsyncadd [#allocation3], 0
      %s25 = sshll.u32 %s3, 4
      %s26 = int_to_ptr.hbm [resolvable:$true] %s25
      %s27 = sshll.u32 [#allocation2], 4
      %s28 = int_to_ptr.vmem [resolvable:$true] %s27
      %33 = dma.hbm_to_vmem [thread:$0]  %s26, 512, %s28, [#allocation3], 64, 64, 4
    $region17: #{tpu_custom_call.1} parent=1 // pred_fallthru
      _
    // Predicated region
    $region18: #{tpu_custom_call.1} parent=1 // pred_check
      _
    $region19: #{tpu_custom_call.1} parent=1 // pred_check_branch
      %35 = sbr.rel (0) target = $region21
    $region20: #{tpu_custom_call.1} parent=1 // pred_region
      _
    $region21: #{tpu_custom_call.1} parent=1 // pred_fallthru
      _
    // Predicated region
    $region22: #{tpu_custom_call.1} parent=1 // pred_check
      _
    $region23: #{tpu_custom_call.1} parent=1 // pred_check_branch
      %37 = sbr.rel (0) target = $region25
    $region24: #{tpu_custom_call.1} parent=1 // pred_region
      %39 = vsyncadd [#allocation6], 0
      %s40 = sshll.u32 %s5, 4
      %s41 = int_to_ptr.hbm [resolvable:$true] %s40
      %s42 = sshll.u32 [#allocation5], 4
      %s43 = int_to_ptr.vmem [resolvable:$true] %s42
      %48 = dma.hbm_to_vmem [thread:$0]  %s41, 512, %s43, [#allocation6], 64, 64, 4
    $region25: #{tpu_custom_call.1} parent=1 // pred_fallthru
      _
    // Predicated region
    $region26: #{tpu_custom_call.1} parent=1 // pred_check
      _
    $region27: #{tpu_custom_call.1} parent=1 // pred_check_branch
      %50 = sbr.rel (0) target = $region29
    $region28: #{tpu_custom_call.1} parent=1 // pred_region
      _
    $region29: #{tpu_custom_call.1} parent=1 // pred_fallthru
      _
    // Predicated region
    $region30: #{tpu_custom_call.1} parent=1 // pred_check
      _
    $region31: #{tpu_custom_call.1} parent=1 // pred_check_branch
      %52 = sbr.rel (0) target = $region33
    $region32: #{tpu_custom_call.1} parent=1 // pred_region
      %54 = dma.done [#allocation3], 512
    $region33: #{tpu_custom_call.1} parent=1 // pred_fallthru
      _
    // Predicated region
    $region34: #{tpu_custom_call.1} parent=1 // pred_check
      _
    $region35: #{tpu_custom_call.1} parent=1 // pred_check_branch
      %56 = sbr.rel (0) target = $region37
    $region36: #{tpu_custom_call.1} parent=1 // pred_region
      %58 = dma.done [#allocation6], 512
    $region37: #{tpu_custom_call.1} parent=1 // pred_fallthru
      _
    %v60 = vld [vmem:[%s0] sm:$0xf]
    %v61 = vld [vmem:[%s1] sm:$0x3]
    %v62 = vld [vmem:[%s2] sm:$0x1]
    %v64 = vperm.slane %v62, 0
    %vm66 = vcmask 23552
    %v68 = vsel %vm66, %v60, 0
    %vm70 = vcmask 1040384
    %vm71 = vcmask 1041408
    %v72 = vsel %vm70, 4294967295, 65535
    %v73 = vsel %vm71, %v72, 0
    %v75 = vand.u32 %v61, %v73
    %77 = vmatpush.bf16.msra.mxu0 0
    %78 = vmatpush.bf16.msra.mxu0 0
    %79 = vmatpush.bf16.msra.mxu0 0
    %80 = vmatpush.bf16.msra.mxu0 0
    %81 = vmatpush.bf16.msra.mxu0 0
    %82 = vmatpush.bf16.msra.mxu0 0
    %83 = vmatpush.bf16.msra.mxu0 0
    %84 = vmatpush.bf16.msra.mxu0 %v75
    %85 = vmatmul.bf16.gmra.mxu0 %v68
    %v86 = vpop.f32.mrf.mxu0
    %v87 = vadd.f32 %v64, %v86
    %v88 = vpop.f32.mrf.mxu0
    %89 = vdwg.mxu0
    %v90 = vmax.f32 %v87, 0.0
    %v91 = vpack.c.bf16 %v90, %v90
    %v92 = vld [vmem:[#allocation2] sm:$0xf]
    %v93 = vld [vmem:[#allocation2 + $0x4] sm:$0xf]
    %v94 = vld [vmem:[#allocation2 + $0x8] sm:$0xf]
    %v95 = vld [vmem:[#allocation2 + $0xc] sm:$0xf]
    %v96 = vld [vmem:[#allocation2 + $0x10] sm:$0xf]
    %v97 = vld [vmem:[#allocation2 + $0x14] sm:$0xf]
    %v98 = vld [vmem:[#allocation2 + $0x18] sm:$0xf]
    %v99 = vld [vmem:[#allocation2 + $0x1c] sm:$0xf]
    %v100 = vld [vmem:[%s4] sm:$0x1]
    %v102 = vperm.slane %v100, 0
    %v112 = vunpack.c.l.b16 %v92
    %v113 = vunpack.c.l.b16 %v93
    %v114 = vunpack.c.l.b16 %v94
    %v115 = vunpack.c.l.b16 %v95
    %v116 = vunpack.c.l.b16 %v96
    %v117 = vunpack.c.l.b16 %v97
    %v118 = vunpack.c.l.b16 %v98
    %v119 = vunpack.c.l.b16 %v99
    %v120 = vpack.c.b16 %v113, %v112
    %v121 = vpack.c.b16 %v115, %v114
    %v122 = vpack.c.b16 %v117, %v116
    %v123 = vpack.c.b16 %v119, %v118
    %vm128 = vcmask 523264
    %v130 = vsel %vm128, %v91, 0
    %132 = vmatpush.bf16.msra.mxu0 0
    %133 = vmatpush.bf16.msra.mxu0 0
    %134 = vmatpush.bf16.msra.mxu0 0
    %135 = vmatpush.bf16.msra.mxu0 0
    %136 = vmatpush.bf16.msra.mxu0 %v123
    %137 = vmatpush.bf16.msra.mxu0 %v122
    %138 = vmatpush.bf16.msra.mxu0 %v121
    %139 = vmatpush.bf16.msra.mxu0 %v120
    %140 = vmatmul.bf16.gmra.mxu0 %v130
    %v141 = vpop.f32.mrf.mxu0
    %v142 = vadd.f32 %v102, %v141
    %v143 = vpop.f32.mrf.mxu0
    %144 = vdwg.mxu0
    %v145 = vmax.f32 %v142, 0.0
    %v146 = vpack.c.bf16 %v145, %v145
    %v147 = vld [vmem:[#allocation5] sm:$0xf]
    %v148 = vld [vmem:[#allocation5 + $0x4] sm:$0xf]
    %v149 = vld [vmem:[#allocation5 + $0x8] sm:$0xf]
    %v150 = vld [vmem:[#allocation5 + $0xc] sm:$0xf]
    %v151 = vld [vmem:[#allocation5 + $0x10] sm:$0xf]
    %v152 = vld [vmem:[#allocation5 + $0x14] sm:$0xf]
    %v153 = vld [vmem:[#allocation5 + $0x18] sm:$0xf]
    %v154 = vld [vmem:[#allocation5 + $0x1c] sm:$0xf]
    %v155 = vld [vmem:[%s6] sm:$0x1]
    %v157 = vperm.slane %v155, 0
    %v167 = vunpack.c.l.b16 %v147
    %v168 = vunpack.c.l.b16 %v148
    %v169 = vunpack.c.l.b16 %v149
    %v170 = vunpack.c.l.b16 %v150
    %v171 = vunpack.c.l.b16 %v151
    %v172 = vunpack.c.l.b16 %v152
    %v173 = vunpack.c.l.b16 %v153
    %v174 = vunpack.c.l.b16 %v154
    %v175 = vpack.c.b16 %v168, %v167
    %v176 = vpack.c.b16 %v170, %v169
    %v177 = vpack.c.b16 %v172, %v171
    %v178 = vpack.c.b16 %v174, %v173
    %v184 = vsel %vm128, %v146, 0
    %186 = vmatpush.bf16.msra.mxu0 0
    %187 = vmatpush.bf16.msra.mxu0 0
    %188 = vmatpush.bf16.msra.mxu0 0
    %189 = vmatpush.bf16.msra.mxu0 0
    %190 = vmatpush.bf16.msra.mxu0 %v178
    %191 = vmatpush.bf16.msra.mxu0 %v177
    %192 = vmatpush.bf16.msra.mxu0 %v176
    %193 = vmatpush.bf16.msra.mxu0 %v175
    %194 = vmatmul.bf16.gmra.mxu0 %v184
    %v195 = vpop.f32.mrf.mxu0
    %v196 = vadd.f32 %v157, %v195
    %v197 = vpop.f32.mrf.mxu0
    %198 = vdwg.mxu0
    %199 = vst [vmem:[#allocation7] sm:$0xff] %v196
    // Predicated region
    $region38: #{tpu_custom_call.1} parent=1 // pred_check
      _
    $region39: #{tpu_custom_call.1} parent=1 // pred_check_branch
      %201 = sbr.rel (0) target = $region41
    $region40: #{tpu_custom_call.1} parent=1 // pred_region
      %203 = vsyncadd [#allocation4], 0
      %s205 = sshll.u32 [#allocation7], 4
      %s206 = int_to_ptr.vmem [resolvable:$true] %s205
      %s207 = sshll.u32 %s7, 4
      %s208 = int_to_ptr.hbm [resolvable:$true] %s207
      %210 = dma.vmem_to_hbm [thread:$0]  %s206, 128, %s208, [#allocation4]
    $region41: #{tpu_custom_call.1} parent=1 // pred_fallthru
      _
    // Predicated region
    $region42: #{tpu_custom_call.1} parent=1 // pred_check
      _
    $region43: #{tpu_custom_call.1} parent=1 // pred_check_branch
      %212 = sbr.rel (0) target = $region45
    $region44: #{tpu_custom_call.1} parent=1 // pred_region
      %214 = dma.done [#allocation4], 128
    $region45: #{tpu_custom_call.1} parent=1 // pred_fallthru
      _
    %215 = vsyncpa [#allocation3], 1
    %216 = vsyncpa [#allocation6], 1
    %217 = vsyncpa [#allocation4], 1

</llo_original>
